<compile_context>
chip_gen: v6e
topology: v6e:2x2x1
jax: 0.10.0
libtpu: 0.0.40
codegen_flags: <defaults>
</compile_context>

<pallas_src>
import jax
import jax.numpy as jnp
from jax import lax
from jax.experimental import pallas as pl
from jax.experimental.pallas import tpu as pltpu

_LANE = 128


def _round_up(v, m):
    return ((v + m - 1) // m) * m


# --------------------------------------------------------------------------- #
# Kernel
# --------------------------------------------------------------------------- #
def _make_kernel(batch_major: bool, use_mxu_for_logits: bool):
    def kernel(x_ref, w1_ref, b1_ref, w2t_ref, b2_ref, out_ref):
        w1 = w1_ref[...]
        x = x_ref[...]

        if batch_major:
            # x: (tb, F) native layout; contract F of both operands -> (H, tb).
            # Mosaic handles the operand re-layout on-chip (XLU slot is idle here).
            h = lax.dot_general(
                w1, x, (((1,), (1,)), ((), ())),
                preferred_element_type=jnp.float32,
            )
        else:
            # x: (F, tb), batch on lanes (bf16 stream, f32 accumulation on the MXU).
            h = jnp.dot(w1, x, preferred_element_type=jnp.float32)

        h = h + b1_ref[...]          # (H, tb) + (H, 1) broadcast over lanes
        r = jnp.maximum(h, 0.0)      # ReLU on the VPU

        # Dropout(p=0.3) -> identity in eval/inference mode.

        if use_mxu_for_logits:
            # General O (or large H): contract H on the (otherwise idle) MXU.
            logits = lax.dot_general(
                w2t_ref[...], r, (((0,), (0,)), ((), ())),
                preferred_element_type=jnp.float32,
            )
        else:
            # O == 1, small H: VPU multiply + XLU sublane reduce is cheaper than
            # an M=1 MXU push and adds no meaningful VALU pressure at small H.
            logits = jnp.sum(r * w2t_ref[...], axis=0, keepdims=True)
        logits = logits + b2_ref[...]

        # Exact sigmoid: exp on the EUP + exact divide; the (O, tb) tile is a
        # handful of vregs so this is invisible next to the DMA-bound main loop.
        out_ref[...] = 1.0 / (1.0 + jnp.exp(-logits))

    return kernel


# --------------------------------------------------------------------------- #
# Tile-size / VMEM-budget derivation
# --------------------------------------------------------------------------- #
def _vmem_budget_bytes():
    """~75% of physical VMEM: ~96 MiB on v5e/v6e (128 MiB), ~48 MiB on v7x (64 MiB)."""
    phys = 64 * 1024 * 1024  # conservative default (v7x-sized) if query fails
    try:
        info = pltpu.get_tpu_info()
        phys = int(getattr(info, "vmem_capacity_bytes", phys) or phys)
    except Exception:
        pass
    return min(int(phys * 0.75), 100 * 1024 * 1024)


def _choose_batch_tile(B, F, H, O, x_itemsize, vmem_budget,
                       target_x_tile_bytes=4 * 1024 * 1024):
    """Largest useful 128-multiple batch tile under the VMEM budget."""
    # Per-batch-column cost: double-buffered x tile + double-buffered out tile
    # + the (H, tb) f32 h/relu strip (x2 as temp slack).
    per_col = 2 * F * x_itemsize + 2 * O * 4 + 2 * H * 4
    # Resident weights/biases (counted double-buffered to be conservative).
    fixed = 2 * (H * F * x_itemsize + H * 4 + H * O * 4 + O * 4)
    avail = max(vmem_budget - fixed - (1 << 20), per_col * _LANE)
    tb_vmem_cap = max(_LANE, (avail // per_col) // _LANE * _LANE)

    # Aim for ~4 MiB of x per grid step (amortizes ~0.35 us/step overhead and
    # gets the DMA near the HBM roofline), but never above the VMEM-derived cap.
    tb_target = max(_LANE, _round_up(target_x_tile_bytes // max(F * x_itemsize, 1), _LANE))
    tb_max = min(tb_vmem_cap, tb_target)

    # Split the batch so the last tile is mostly real work; keep >= 2 grid steps
    # (when the batch allows it) so "parallel" sharding engages both v7x TCs.
    n_steps = max(1, -(-B // tb_max))
    if n_steps == 1 and B > _LANE:
        n_steps = 2
    tb = min(tb_max, _round_up(-(-B // n_steps), _LANE))
    return max(tb, _LANE)


# --------------------------------------------------------------------------- #
# Forward pass
# --------------------------------------------------------------------------- #
def binary_classifier_forward(x, params, *, eps=1e-5, block_b=None):
    """Fused forward pass.

    x: (batch, input_features) float32
    params: dict with bn_gamma, bn_beta, bn_mean, bn_var, w1 (H,F), b1 (H,),
            w2 (O,H), b2 (O,) — PyTorch-shaped parameters.
    Returns (batch, output_dim) float32, matching the PyTorch module (eval mode).
    """
    B, F = x.shape
    H = params["w1"].shape[0]
    O = params["w2"].shape[0]

    # --- Fold BatchNorm1d (inference) into the first Linear (host-side, tiny) ---
    bn_scale = params["bn_gamma"] / jnp.sqrt(params["bn_var"] + eps)      # (F,)
    bn_shift = params["bn_beta"] - params["bn_mean"] * bn_scale           # (F,)
    w1_fused = (params["w1"] * bn_scale[None, :]).astype(jnp.float32)     # (H, F)
    b1_fused = (params["b1"] + params["w1"] @ bn_shift).astype(jnp.float32).reshape(H, 1)
    w2_t = params["w2"].T.astype(jnp.float32)                             # (H, O)
    b2 = params["b2"].astype(jnp.float32).reshape(O, 1)                   # (O, 1)

    # --- Layout / streaming-dtype decision ---
    batch_major = (F % _LANE == 0)
    if batch_major:
        # Native (B, F) layout: no host pad+transpose pass; stream caller dtype.
        x_stream = x
        w1_k = w1_fused
    else:
        # F < 128: keep batch-on-lanes (F, B) layout, but do the single
        # pad+transpose pass — and the dominant MXU stream — in bf16.
        x_stream = x.astype(jnp.bfloat16)
        w1_k = w1_fused.astype(jnp.bfloat16)
    x_itemsize = jnp.dtype(x_stream.dtype).itemsize

    vmem_budget = _vmem_budget_bytes()
    tb = block_b if block_b is not None else _choose_batch_tile(
        B, F, H, O, x_itemsize, vmem_budget)
    tb = max(_LANE, _round_up(int(tb), _LANE))
    b_pad = _round_up(B, tb)
    grid = (b_pad // tb,)

    if batch_major:
        x_in = x_stream if b_pad == B else jnp.pad(x_stream, ((0, b_pad - B), (0, 0)))
        x_spec = pl.BlockSpec((tb, F), lambda i: (i, 0))          # (b_pad, F) tiles
    else:
        x_pad = x_stream if b_pad == B else jnp.pad(x_stream, ((0, b_pad - B), (0, 0)))
        x_in = x_pad.T                                            # (F, b_pad)
        x_spec = pl.BlockSpec((F, tb), lambda i: (0, i))

    use_mxu_for_logits = (O > 1) or (H >= 256)
    kernel = _make_kernel(batch_major, use_mxu_for_logits)

    out_t = pl.pallas_call(
        kernel,
        out_shape=jax.ShapeDtypeStruct((O, b_pad), jnp.float32),
        grid=grid,
        in_specs=[
            x_spec,                                      # x tile streams over batch
            pl.BlockSpec((H, F), lambda i: (0, 0)),      # w1 resident across steps
            pl.BlockSpec((H, 1), lambda i: (0, 0)),      # b1
            pl.BlockSpec((H, O), lambda i: (0, 0)),      # w2^T
            pl.BlockSpec((O, 1), lambda i: (0, 0)),      # b2
        ],
        out_specs=pl.BlockSpec((O, tb), lambda i: (0, i)),
        compiler_params=pltpu.CompilerParams(
            dimension_semantics=("parallel",),           # shard batch across TCs (v7x)
            vmem_limit_bytes=int(vmem_budget),           # 96 MiB v5e/v6e, 48 MiB v7x
        ),
    )(x_in, w1_k, b1_fused, w2_t, b2)

    # Drop padded batch columns; the (O, B) -> (B, O) transpose is tiny.
    return out_t[:, :B].T


# --------------------------------------------------------------------------- #
# Parameters / reference
# --------------------------------------------------------------------------- #
def init_params(key, input_features, hidden_dim, output_dim):
    """Deterministic synthetic parameters matching the PyTorch module's shapes."""
    k1, k2, k3, k4, k5, k6 = jax.random.split(key, 6)
    return {
        # BatchNorm1d(input_features): weight, bias, running_mean, running_var
        "bn_gamma": jax.random.uniform(k1, (input_features,), jnp.float32, 0.5, 1.5),
        "bn_beta": jax.random.normal(k2, (input_features,)) * 0.1,
        "bn_mean": jax.random.normal(k3, (input_features,)) * 0.1,
        "bn_var": jax.random.uniform(k4, (input_features,), jnp.float32, 0.5, 1.5),
        # Linear(input_features, hidden_dim): weight (H, F), bias (H,)
        "w1": jax.random.normal(k5, (hidden_dim, input_features)) * 0.1,
        "b1": jnp.zeros((hidden_dim,), jnp.float32),
        # Linear(hidden_dim, output_dim): weight (O, H), bias (O,)
        "w2": jax.random.normal(k6, (output_dim, hidden_dim)) * 0.1,
        "b2": jnp.zeros((output_dim,), jnp.float32),
    }


def reference_forward(x, params):
    """Pure-JAX f32 reference (eval-mode PyTorch semantics)."""
    eps = 1e-5
    n = (x - params["bn_mean"]) / jnp.sqrt(params["bn_var"] + eps)
    n = n * params["bn_gamma"] + params["bn_beta"]
    h = n @ params["w1"].T + params["b1"]
    r = jnp.maximum(h, 0.0)
    logits = r @ params["w2"].T + params["b2"]
    return jax.nn.sigmoid(logits)


if __name__ == "__main__":
    input_features = 32
    hidden_dim = 32
    output_dim = 1

    key = jax.random.PRNGKey(0)
    kx, kp, kx2 = jax.random.split(key, 3)
    params = init_params(kp, input_features, hidden_dim, output_dim)

    # Primary small-shape check (batch=2), per the module spec.
    batch = 2
    x = jax.random.normal(kx, (batch, input_features), jnp.float32)
    out = jax.block_until_ready(binary_classifier_forward(x, params))
    ref = reference_forward(x, params)
    assert out.shape == (batch, output_dim)
    # Tolerance reflects the bf16 activation/weight stream into the MXU
    # (f32 accumulation, exact sigmoid); typical disagreement is ~1e-4.
    assert jnp.allclose(out, ref, atol=5e-3, rtol=5e-3), (out, ref)

    # Secondary check: multi-tile grid (>=2 "parallel" steps), adaptive tb.
    batch2 = 384
    x2 = jax.random.normal(kx2, (batch2, input_features), jnp.float32)
    out2 = jax.block_until_ready(binary_classifier_forward(x2, params))
    ref2 = reference_forward(x2, params)
    assert out2.shape == (batch2, output_dim)
    assert jnp.allclose(out2, ref2, atol=5e-3, rtol=5e-3)

    print("KERNEL_OK")
</pallas_src>

<mosaic_0001>
module attributes {stable_mosaic.version = 11 : i64} {
  func.func @kernel(%arg0: i32, %arg1: memref<32x128xbf16, #tpu.memory_space<vmem>>, %arg2: memref<32x32xbf16, #tpu.memory_space<vmem>>, %arg3: memref<32x1xf32, #tpu.memory_space<vmem>>, %arg4: memref<32x1xf32, #tpu.memory_space<vmem>>, %arg5: memref<1x1xf32, #tpu.memory_space<vmem>>, %arg6: memref<1x128xf32, #tpu.memory_space<vmem>>) attributes {dimension_semantics = [#tpu.dimension_semantics<parallel>], iteration_bounds = array<i64: 1>, scalar_prefetch = 0 : i64, scratch_operands = 0 : i64, tpu.core_type = #tpu.core_type<tc>, window_params = [{transform_indices = @transform_0, window_bounds = array<i64: 32, 128>}, {pipeline_mode = #tpu.pipeline_mode<synchronous>, transform_indices = @transform_1, window_bounds = array<i64: 32, 32>}, {pipeline_mode = #tpu.pipeline_mode<synchronous>, transform_indices = @transform_2, window_bounds = array<i64: 32, 1>}, {pipeline_mode = #tpu.pipeline_mode<synchronous>, transform_indices = @transform_3, window_bounds = array<i64: 32, 1>}, {pipeline_mode = #tpu.pipeline_mode<synchronous>, transform_indices = @transform_4, window_bounds = array<i64: 1, 1>}, {transform_indices = @transform_5, window_bounds = array<i64: 1, 128>}]} {
    %c0 = arith.constant 0 : index
    %c0_0 = arith.constant 0 : index
    %0 = vector.load %arg2[%c0, %c0_0] : memref<32x32xbf16, #tpu.memory_space<vmem>>, vector<32x32xbf16>
    %c0_1 = arith.constant 0 : index
    %c0_2 = arith.constant 0 : index
    %1 = vector.load %arg1[%c0_1, %c0_2] : memref<32x128xbf16, #tpu.memory_space<vmem>>, vector<32x128xbf16>
    %cst = arith.constant dense<0.000000e+00> : vector<32x128xf32>
    %2 = tpu.matmul %0, %1, %cst {dimension_numbers = #tpu.dot_dimension_numbers<[1], [0], [0], [1], [0, 0, 1, 1], [], []>} : vector<32x32xbf16>, vector<32x128xbf16>, vector<32x128xf32> -> vector<32x128xf32>
    %c0_3 = arith.constant 0 : index
    %c0_4 = arith.constant 0 : index
    %3 = vector.load %arg3[%c0_3, %c0_4] : memref<32x1xf32, #tpu.memory_space<vmem>>, vector<32x1xf32>
    %4 = vector.broadcast %3 : vector<32x1xf32> to vector<32x128xf32>
    %5 = arith.addf %2, %4 : vector<32x128xf32>
    %cst_5 = arith.constant 0.000000e+00 : f32
    %6 = vector.broadcast %cst_5 : f32 to vector<32x128xf32>
    %7 = arith.maximumf %5, %6 : vector<32x128xf32>
    %c0_6 = arith.constant 0 : index
    %c0_7 = arith.constant 0 : index
    %8 = vector.load %arg4[%c0_6, %c0_7] : memref<32x1xf32, #tpu.memory_space<vmem>>, vector<32x1xf32>
    %9 = vector.broadcast %8 : vector<32x1xf32> to vector<32x128xf32>
    %10 = arith.mulf %7, %9 : vector<32x128xf32>
    %cst_8 = arith.constant dense<0.000000e+00> : vector<128xf32>
    %11 = vector.multi_reduction <add>, %10, %cst_8 [0] : vector<32x128xf32> to vector<128xf32>
    %12 = vector.shape_cast %11 : vector<128xf32> to vector<1x128xf32>
    %c0_9 = arith.constant 0 : index
    %c0_10 = arith.constant 0 : index
    %13 = vector.load %arg5[%c0_9, %c0_10] : memref<1x1xf32, #tpu.memory_space<vmem>>, vector<1x1xf32>
    %14 = vector.broadcast %13 : vector<1x1xf32> to vector<1x128xf32>
    %15 = arith.addf %12, %14 : vector<1x128xf32>
    %cst_11 = arith.constant 0.000000e+00 : f32
    %16 = vector.broadcast %cst_11 : f32 to vector<1x128xf32>
    %17 = arith.subf %16, %15 : vector<1x128xf32>
    %18 = math.exp %17 : vector<1x128xf32>
    %cst_12 = arith.constant 1.000000e+00 : f32
    %19 = vector.broadcast %cst_12 : f32 to vector<1x128xf32>
    %20 = arith.addf %19, %18 : vector<1x128xf32>
    %cst_13 = arith.constant 1.000000e+00 : f32
    %21 = vector.broadcast %cst_13 : f32 to vector<1x128xf32>
    %22 = arith.divf %21, %20 : vector<1x128xf32>
    %c0_14 = arith.constant 0 : index
    %c0_15 = arith.constant 0 : index
    %23 = vector.load %arg6[%c0_14, %c0_15] : memref<1x128xf32, #tpu.memory_space<vmem>>, vector<1x128xf32>
    tpu.vector_store %arg6[%c0_14, %c0_15], %22 {strides = array<i32>} : memref<1x128xf32, #tpu.memory_space<vmem>>, vector<1x128xf32>,
    return
  }
  func.func @transform_0(%arg0: i32) -> (i32, i32) {
    %c0_i32 = arith.constant 0 : i32
    %c0_i32_0 = arith.constant 0 : i32
    return %c0_i32, %arg0 : i32, i32
  }
  func.func @transform_1(%arg0: i32) -> (i32, i32) {
    %c0_i32 = arith.constant 0 : i32
    %c0_i32_0 = arith.constant 0 : i32
    %c0_i32_1 = arith.constant 0 : i32
    return %c0_i32, %c0_i32_0 : i32, i32
  }
  func.func @transform_2(%arg0: i32) -> (i32, i32) {
    %c0_i32 = arith.constant 0 : i32
    %c0_i32_0 = arith.constant 0 : i32
    %c0_i32_1 = arith.constant 0 : i32
    return %c0_i32, %c0_i32_0 : i32, i32
  }
  func.func @transform_3(%arg0: i32) -> (i32, i32) {
    %c0_i32 = arith.constant 0 : i32
    %c0_i32_0 = arith.constant 0 : i32
    %c0_i32_1 = arith.constant 0 : i32
    return %c0_i32, %c0_i32_0 : i32, i32
  }
  func.func @transform_4(%arg0: i32) -> (i32, i32) {
    %c0_i32 = arith.constant 0 : i32
    %c0_i32_0 = arith.constant 0 : i32
    %c0_i32_1 = arith.constant 0 : i32
    return %c0_i32, %c0_i32_0 : i32, i32
  }
  func.func @transform_5(%arg0: i32) -> (i32, i32) {
    %c0_i32 = arith.constant 0 : i32
    %c0_i32_0 = arith.constant 0 : i32
    return %c0_i32, %arg0 : i32, i32
  }
}

</mosaic_0001>

<llo_original>
// kernel: tpu_custom_call.1
$region0: #{tpu_custom_call.1}
  #allocation0 [shape = 'u32[]', space=smem, size = 0x4, offset = 0x4, fixed_abs, tag = 'smem constant byte address 0x4 - core index']
  #allocation1 [shape = 'u32[144,128]{1,0:T(1,128)}', space=vmem, size = 0x12000, scoped, tag = 'internal scratch']
  #allocation2 [shape = 'f32[1,1]{1,0:T(1,128)S(1)}', space=vmem, size = 0x200, scoped, tag = 'scoped memory for tpu_custom_call.1']
  %s0 = inlined_call_operand.vmem [shape: bf16[32,128], index: 0, kind: input, shape index: {}]
  %s1 = inlined_call_operand.vmem [shape: bf16[32,32], index: 1, kind: input, shape index: {}]
  %s2 = inlined_call_operand.vmem [shape: f32[32,1], index: 2, kind: input, shape index: {}]
  %s3 = inlined_call_operand.vmem [shape: f32[32,1], index: 3, kind: input, shape index: {}]
  %s4 = inlined_call_operand.<no memory space> [shape: f32[1,1], index: 4, kind: input, shape index: {}]
  %s5 = inlined_call_operand.hbm [shape: f32[1,128], index: 5, kind: output, shape index: {}]
  %s6 = sld [smem:[#allocation0]]
  $region30: #{tpu_custom_call.1} parent=0
    _
  %s8 = ssub.s32 1, %s6
  %s9 = scalar_select 0, %s8, %s6
  %v10 = vstv %s4
  %11 = vst [vmem:[#allocation2] sm:$0x1] %v10
  $region1: #{tpu_custom_call.1} parent=0
    #allocation3 [shape = 'u8[512]{0}', space=vmem, size = 0x400, scoped, tag = 'output window, operand 0, single buffered']
    #allocation4 [shape = 's32[1]{0}', space=sflag, size = 0x4, scoped, tag = 'scoped memory for tpu_custom_call.1']
    %12 = vsyncpa [#allocation4], 0
    // Predicated region
    $region2: #{tpu_custom_call.1} parent=1 // pred_check
      _
    $region3: #{tpu_custom_call.1} parent=1 // pred_check_branch
      %14 = sbr.rel (0) target = $region5
    $region4: #{tpu_custom_call.1} parent=1 // pred_region
      _
    $region5: #{tpu_custom_call.1} parent=1 // pred_fallthru
      _
    // Predicated region
    $region6: #{tpu_custom_call.1} parent=1 // pred_check
      _
    $region7: #{tpu_custom_call.1} parent=1 // pred_check_branch
      %16 = sbr.rel (0) target = $region9
    $region8: #{tpu_custom_call.1} parent=1 // pred_region
      _
    $region9: #{tpu_custom_call.1} parent=1 // pred_fallthru
      _
    // Predicated region
    $region10: #{tpu_custom_call.1} parent=1 // pred_check
      _
    $region11: #{tpu_custom_call.1} parent=1 // pred_check_branch
      %18 = sbr.rel (0) target = $region13
    $region12: #{tpu_custom_call.1} parent=1 // pred_region
      _
    $region13: #{tpu_custom_call.1} parent=1 // pred_fallthru
      _
    // Predicated region
    $region14: #{tpu_custom_call.1} parent=1 // pred_check
      _
    $region15: #{tpu_custom_call.1} parent=1 // pred_check_branch
      %20 = sbr.rel (0) target = $region17
    $region16: #{tpu_custom_call.1} parent=1 // pred_region
      _
    $region17: #{tpu_custom_call.1} parent=1 // pred_fallthru
      _
    // Predicated region
    $region18: #{tpu_custom_call.1} parent=1 // pred_check
      _
    $region19: #{tpu_custom_call.1} parent=1 // pred_check_branch
      %22 = sbr.rel (0) target = $region21
    $region20: #{tpu_custom_call.1} parent=1 // pred_region
      _
    $region21: #{tpu_custom_call.1} parent=1 // pred_fallthru
      _
    %v24 = vld [vmem:[%s1] sm:$0xf]
    %v25 = vld [vmem:[%s1 + $0x4] sm:$0xf]
    %v26 = vld [vmem:[%s1 + $0x8] sm:$0xf]
    %v27 = vld [vmem:[%s1 + $0xc] sm:$0xf]
    %v28 = vld [vmem:[%s0] sm:$0xf]
    %v29 = vld [vmem:[%s0 + $0x4] sm:$0xf]
    %v30 = vld [vmem:[%s0 + $0x8] sm:$0xf]
    %v31 = vld [vmem:[%s0 + $0xc] sm:$0xf]
    %v32 = vld [vmem:[%s2] sm:$0xff]
    %v33 = vld [vmem:[%s2 + $0x8] sm:$0xff]
    %v34 = vld [vmem:[%s2 + $0x10] sm:$0xff]
    %v35 = vld [vmem:[%s2 + $0x18] sm:$0xff]
    %37 = vset.pattern.permute.xlu0 0
    %38 = vperm.xlu0 %37, %v32
    %v39 = vpop.permute.xlu0 %38
    %42 = vset.pattern.permute.xlu0 0
    %43 = vperm.xlu0 %42, %v33
    %v44 = vpop.permute.xlu0 %43
    %47 = vset.pattern.permute.xlu0 0
    %48 = vperm.xlu0 %47, %v34
    %v49 = vpop.permute.xlu0 %48
    %52 = vset.pattern.permute.xlu0 0
    %53 = vperm.xlu0 %52, %v35
    %v54 = vpop.permute.xlu0 %53
    %v60 = vunpack.c.l.b16 %v24
    %v61 = vunpack.c.l.b16 %v25
    %v62 = vunpack.c.l.b16 %v26
    %v63 = vunpack.c.l.b16 %v27
    %v64 = vpack.c.b16 %v61, %v60
    %v65 = vpack.c.b16 %v63, %v62
    %v70 = vunpack.c.l.b16 %v28
    %v71 = vunpack.c.l.b16 %v29
    %v72 = vunpack.c.l.b16 %v30
    %v73 = vunpack.c.l.b16 %v31
    %v74 = vpack.c.b16 %v71, %v70
    %v75 = vpack.c.b16 %v73, %v72
    %vm78 = vcmask 261120
    %v80 = vsel %vm78, %v64, 0
    %v83 = vsel %vm78, %v65, 0
    %85 = vmatprep.subr.bf16.mxu0 0
    %86 = vmatpush1.bf16.msra.mxu0 0
    %87 = vmatprep.subr.bf16.mxu0 0
    %88 = vmatpush1.bf16.msra.mxu0 0
    %89 = vmatprep.subr.bf16.mxu0 0
    %90 = vmatpush1.bf16.msra.mxu0 0
    %91 = vmatprep.subr.bf16.mxu0 0
    %92 = vmatpush1.bf16.msra.mxu0 0
    %93 = vmatprep.subr.bf16.mxu0 0
    %94 = vmatpush1.bf16.msra.mxu0 0
    %95 = vmatprep.subr.bf16.mxu0 0
    %96 = vmatpush1.bf16.msra.mxu0 0
    %97 = vmatprep.subr.bf16.mxu0 0
    %98 = vmatpush1.bf16.msra.mxu0 %v75
    %99 = vmatprep.subr.bf16.mxu0 0
    %100 = vmatpush1.bf16.msra.mxu0 %v74
    %101 = vmatprep.subr.bf16.mxu0 0
    %102 = vmatpush2.bf16.msra.mxu0 0
    %103 = vmatprep.subr.bf16.mxu0 0
    %104 = vmatpush2.bf16.msra.mxu0 0
    %105 = vmatprep.subr.bf16.mxu0 0
    %106 = vmatpush2.bf16.msra.mxu0 0
    %107 = vmatprep.subr.bf16.mxu0 0
    %108 = vmatpush2.bf16.msra.mxu0 0
    %109 = vmatprep.subr.bf16.mxu0 0
    %110 = vmatpush2.bf16.msra.mxu0 0
    %111 = vmatprep.subr.bf16.mxu0 0
    %112 = vmatpush2.bf16.msra.mxu0 0
    %113 = vmatprep.subr.bf16.mxu0 0
    %114 = vmatpush2.bf16.msra.mxu0 0
    %115 = vmatprep.subr.bf16.mxu0 0
    %116 = vmatpush2.bf16.msra.mxu0 0
    %117 = vmatprep.mubr.bf16.mxu0 0
    %118 = vmatmul.mubr.bf16.gmra.mxu0 %v80
    %v119 = vpop.f32.mrf.mxu0
    %v120 = vadd.f32 %v39, %v119
    %v121 = vpop.f32.mrf.mxu0
    %v122 = vpop.f32.mrf.mxu0
    %v123 = vadd.f32 %v44, %v122
    %v124 = vpop.f32.mrf.mxu0
    %125 = vmatprep.mubr.bf16.mxu0 0
    %126 = vmatmul.mubr.bf16.gmra.mxu0 %v83
    %v127 = vpop.f32.mrf.mxu0
    %v128 = vadd.f32 %v49, %v127
    %v129 = vpop.f32.mrf.mxu0
    %v130 = vpop.f32.mrf.mxu0
    %v131 = vadd.f32 %v54, %v130
    %v132 = vpop.f32.mrf.mxu0
    %133 = vdwg.mxu0
    %v134 = vmax.f32 %v120, 0.0
    %v135 = vmax.f32 %v123, 0.0
    %v136 = vmax.f32 %v128, 0.0
    %v137 = vmax.f32 %v131, 0.0
    %v138 = vld [vmem:[%s3] sm:$0xff]
    %v139 = vld [vmem:[%s3 + $0x8] sm:$0xff]
    %v140 = vld [vmem:[%s3 + $0x10] sm:$0xff]
    %v141 = vld [vmem:[%s3 + $0x18] sm:$0xff]
    %143 = vset.pattern.permute.xlu0 0
    %144 = vperm.xlu0 %143, %v138
    %v145 = vpop.permute.xlu0 %144
    %148 = vset.pattern.permute.xlu0 0
    %149 = vperm.xlu0 %148, %v139
    %v150 = vpop.permute.xlu0 %149
    %153 = vset.pattern.permute.xlu0 0
    %154 = vperm.xlu0 %153, %v140
    %v155 = vpop.permute.xlu0 %154
    %158 = vset.pattern.permute.xlu0 0
    %159 = vperm.xlu0 %158, %v141
    %v160 = vpop.permute.xlu0 %159
    %v162 = vmul.f32 %v134, %v145
    %v163 = vmul.f32 %v135, %v150
    %v164 = vmul.f32 %v136, %v155
    %v165 = vmul.f32 %v137, %v160
    %v166 = vadd.f32 %v162, %v163
    %v167 = vadd.f32 %v166, %v164
    %v168 = vadd.f32 %v167, %v165
    %v169 = vrot.slane %v168, 4
    %v170 = vadd.f32 %v168, %v169
    %v171 = vrot.slane %v170, 2
    %v172 = vadd.f32 %v170, %v171
    %v173 = vrot.slane %v172, 1
    %v174 = vadd.f32 %v172, %v173
    %v175 = vld [vmem:[#allocation2] sm:$0x1]
    %177 = vset.pattern.permute.xlu0 0
    %178 = vperm.xlu0 %177, %v175
    %v179 = vpop.permute.xlu0 %178
    %v181 = vlaneseq
    %v182 = vshrl.u32 %v181, 7
    %v183 = vsub.s32 0, %v182
    %v184 = vrot.slane %v179, %v183
    %v185 = vadd.f32 %v174, %v184
    %v186 = vsub.f32 0.0, %v185
    %v187 = vmul.f32 %v186, 1.442695
    %v188 = vpow.pop %v187
    %v189 = vadd.f32 %v188, 1.0
    %v190 = vrcp.pop %v189
    %v191 = vmul.f32 1.0, %v190
    %192 = vst [vmem:[#allocation3] sm:$0x1] %v191
    // Predicated region
    $region22: #{tpu_custom_call.1} parent=1 // pred_check
      _
    $region23: #{tpu_custom_call.1} parent=1 // pred_check_branch
      %194 = sbr.rel (0) target = $region25
    $region24: #{tpu_custom_call.1} parent=1 // pred_region
      %s196 = ssub.s32 16, 16
      %197 = vsyncadd [#allocation4], %s196
      %s199 = sshll.u32 [#allocation3], 4
      %s200 = int_to_ptr.vmem [resolvable:$true] %s199
      %202 = dma.vmem_to_hbm [thread:$0]  %s200, 16, %s5, [#allocation4]
    $region25: #{tpu_custom_call.1} parent=1 // pred_fallthru
      _
    // Predicated region
    $region26: #{tpu_custom_call.1} parent=1 // pred_check
      _
    $region27: #{tpu_custom_call.1} parent=1 // pred_check_branch
      %204 = sbr.rel (0) target = $region29
    $region28: #{tpu_custom_call.1} parent=1 // pred_region
      %205 = dma.done [#allocation4], 16
    $region29: #{tpu_custom_call.1} parent=1 // pred_fallthru
      _
    %206 = vsyncpa [#allocation4], 1

</llo_original>
